<compile_context>
chip_gen: v7x
topology: tpu7x:2x2x1
jax: 0.10.0
libtpu: 0.0.40
codegen_flags: <defaults>
</compile_context>

<pallas_src>
import math

import jax
import jax.numpy as jnp
from jax import lax
from jax.experimental import pallas as pl
from jax.experimental.pallas import tpu as pltpu


def _make_kernel(out_dim, final_activation):
    """Build the fused MLP kernel (out_dim / activation are static)."""

    def kernel(s_ref, a_ref, w1s_ref, w1a_ref, b1_ref, w2_ref, b2_ref,
               w3_ref, b3_ref, out_ref, h1_ref, h2_ref):
        bf16 = jnp.bfloat16

        # ---- layer 1: fused concat -> two bf16 matmuls into one f32 accumulator
        h1 = jnp.dot(s_ref[...].astype(bf16), w1s_ref[...].astype(bf16),
                     preferred_element_type=jnp.float32)
        h1 = h1 + jnp.dot(a_ref[...].astype(bf16), w1a_ref[...].astype(bf16),
                          preferred_element_type=jnp.float32)
        h1 = jnp.maximum(h1 + b1_ref[...], 0.0)          # bias + ReLU in f32
        h1_ref[...] = h1                                  # explicit VMEM staging

        # ---- layer 2
        h2 = jnp.dot(h1_ref[...].astype(bf16), w2_ref[...].astype(bf16),
                     preferred_element_type=jnp.float32)
        h2 = jnp.maximum(h2 + b2_ref[...], 0.0)
        h2_ref[...] = h2

        # ---- layer 3 (output lanes padded to a multiple of 128 by the wrapper)
        o = jnp.dot(h2_ref[...].astype(bf16), w3_ref[...].astype(bf16),
                    preferred_element_type=jnp.float32)
        o = o + b3_ref[...]

        if final_activation == "tanh":
            o = jnp.tanh(o)
        elif final_activation == "softmax":
            # mask the zero-padded lanes so they do not contribute to softmax
            col = lax.broadcasted_iota(jnp.int32, o.shape, 1)
            o = jnp.where(col < out_dim, o, -jnp.inf)
            o = jax.nn.softmax(o, axis=-1)

        out_ref[...] = o.astype(out_ref.dtype)

    return kernel


def _choose_batch_tile(B):
    # Full batch in one block when small (block_shape == array dim is always
    # legal); otherwise MXU-edge-aligned tiles (128 fills v5e's 4x128x128 MXU,
    # fine on v6e/v7x too) large enough to amortize per-step grid overhead.
    if B <= 128:
        return B
    if B < 512:
        return 128
    return 256


def q_network_forward(states, actions, params, final_activation=None):
    """states: (B, S), actions: (B, A). Returns (B, output_dim) float32."""
    w1, b1, w2, b2, w3, b3 = params
    B, S = states.shape
    A = actions.shape[1]
    H1 = w1.shape[1]
    H2 = w2.shape[1]
    out_dim = w3.shape[1]

    # Fuse torch.cat into the first matmul: split W1 along its input axis.
    w1s, w1a = w1[:S], w1[S:]

    # Lane-dense output: pad last layer out to a multiple of 128 lanes.
    out_pad = pl.cdiv(out_dim, 128) * 128
    if out_pad != out_dim:
        w3p = jnp.pad(w3, ((0, 0), (0, out_pad - out_dim)))
        b3p = jnp.pad(b3, ((0, 0), (0, out_pad - out_dim)))
    else:
        w3p, b3p = w3, b3

    TB = _choose_batch_tile(B)
    grid = (pl.cdiv(B, TB),)

    # Weights/biases: same block every step -> fetched once, VMEM resident.
    resident = lambda arr: pl.BlockSpec(arr.shape, lambda i: (0, 0))

    flops = 2 * B * (S * H1 + A * H1 + H1 * H2 + H2 * out_pad)
    transcendentals = B * out_pad if final_activation in ("tanh", "softmax") else 0
    param_bytes = sum(int(p.size) * p.dtype.itemsize
                      for p in (w1s, w1a, b1, w2, b2, w3p, b3p))
    bytes_accessed = (int(states.size) * states.dtype.itemsize
                      + int(actions.size) * actions.dtype.itemsize
                      + param_bytes + B * out_pad * 4)
    cost = pl.CostEstimate(flops=flops, transcendentals=transcendentals,
                           bytes_accessed=bytes_accessed)

    out_padded = pl.pallas_call(
        _make_kernel(out_dim, final_activation),
        out_shape=jax.ShapeDtypeStruct((B, out_pad), jnp.float32),
        grid_spec=pltpu.PrefetchScalarGridSpec(
            num_scalar_prefetch=0,
            grid=grid,
            in_specs=[
                pl.BlockSpec((TB, S), lambda i: (i, 0)),   # states tile
                pl.BlockSpec((TB, A), lambda i: (i, 0)),   # actions tile
                resident(w1s), resident(w1a), resident(b1),
                resident(w2), resident(b2),
                resident(w3p), resident(b3p),
            ],
            out_specs=pl.BlockSpec((TB, out_pad), lambda i: (i, 0)),
            scratch_shapes=[pltpu.VMEM((TB, H1), jnp.float32),
                            pltpu.VMEM((TB, H2), jnp.float32)],
        ),
        compiler_params=pltpu.CompilerParams(
            dimension_semantics=("parallel",)),   # v7x: shard tiles over 2 TCs
        cost_estimate=cost,
    )(states, actions, w1s, w1a, b1, w2, b2, w3p, b3p)

    return out_padded[:, :out_dim] if out_pad != out_dim else out_padded


def init_params(key, input_dim, output_dim, hidden_dims=(256, 256)):
    """PyTorch-style uniform(-1/sqrt(fan_in), 1/sqrt(fan_in)) init; W stored (in, out)."""
    dims = [input_dim] + list(hidden_dims) + [output_dim]
    params = []
    for i in range(len(dims) - 1):
        fan_in, fan_out = dims[i], dims[i + 1]
        bound = 1.0 / math.sqrt(fan_in)
        key, kw, kb = jax.random.split(key, 3)
        w = jax.random.uniform(kw, (fan_in, fan_out), jnp.float32, -bound, bound)
        b = jax.random.uniform(kb, (1, fan_out), jnp.float32, -bound, bound)
        params += [w, b]
    return tuple(params)


def reference_forward(states, actions, params, final_activation=None):
    x = jnp.concatenate([states, actions], axis=1)
    w1, b1, w2, b2, w3, b3 = params
    h1 = jnp.maximum(x @ w1 + b1, 0.0)
    h2 = jnp.maximum(h1 @ w2 + b2, 0.0)
    o = h2 @ w3 + b3
    if final_activation == "tanh":
        return jnp.tanh(o)
    if final_activation == "softmax":
        return jax.nn.softmax(o, axis=1)
    return o


if __name__ == "__main__":
    key = jax.random.PRNGKey(0)
    k_params, k_s, k_a, k_s2, k_a2 = jax.random.split(key, 5)

    state_dim = 12
    action_dim = 4
    output_dim = 4          # Q-values, final_activation=None (module default)

    params = init_params(k_params, state_dim + action_dim, output_dim)

    # Small demo batch (single grid step).
    batch = 4
    states = jax.random.normal(k_s, (batch, state_dim), jnp.float32)
    actions = jax.random.normal(k_a, (batch, action_dim), jnp.float32)
    out = jax.block_until_ready(q_network_forward(states, actions, params))
    ref = reference_forward(states, actions, params)
    assert out.shape == (batch, output_dim)
    # bf16 matmul inputs (f32 accumulation) -> loosen tolerance vs f32 reference
    assert jnp.allclose(out, ref, atol=2e-2, rtol=2e-2), "mismatch vs reference (B=4)"

    # Batch-tiled path (multi-step grid with a partial boundary block).
    batch2 = 192
    states2 = jax.random.normal(k_s2, (batch2, state_dim), jnp.float32)
    actions2 = jax.random.normal(k_a2, (batch2, action_dim), jnp.float32)
    out2 = jax.block_until_ready(q_network_forward(states2, actions2, params))
    ref2 = reference_forward(states2, actions2, params)
    assert out2.shape == (batch2, output_dim)
    assert jnp.allclose(out2, ref2, atol=2e-2, rtol=2e-2), "mismatch vs reference (B=192)"

    print("KERNEL_OK")
</pallas_src>

<mosaic_0001>
module attributes {stable_mosaic.version = 11 : i64} {
  func.func @kernel(%arg0: i32, %arg1: memref<4x12xf32, #tpu.memory_space<vmem>>, %arg2: memref<4x4xf32, #tpu.memory_space<vmem>>, %arg3: memref<12x256xf32, #tpu.memory_space<vmem>>, %arg4: memref<4x256xf32, #tpu.memory_space<vmem>>, %arg5: memref<1x256xf32, #tpu.memory_space<vmem>>, %arg6: memref<256x256xf32, #tpu.memory_space<vmem>>, %arg7: memref<1x256xf32, #tpu.memory_space<vmem>>, %arg8: memref<256x128xf32, #tpu.memory_space<vmem>>, %arg9: memref<1x128xf32, #tpu.memory_space<vmem>>, %arg10: memref<4x128xf32, #tpu.memory_space<vmem>>, %arg11: memref<4x256xf32, #tpu.memory_space<vmem>>, %arg12: memref<4x256xf32, #tpu.memory_space<vmem>>) attributes {dimension_semantics = [#tpu.dimension_semantics<parallel>], iteration_bounds = array<i64: 1>, scalar_prefetch = 0 : i64, scratch_operands = 2 : i64, tpu.core_type = #tpu.core_type<tc>, window_params = [{transform_indices = @transform_0, window_bounds = array<i64: 4, 12>}, {transform_indices = @transform_1, window_bounds = array<i64: 4, 4>}, {pipeline_mode = #tpu.pipeline_mode<synchronous>, transform_indices = @transform_2, window_bounds = array<i64: 12, 256>}, {pipeline_mode = #tpu.pipeline_mode<synchronous>, transform_indices = @transform_3, window_bounds = array<i64: 4, 256>}, {pipeline_mode = #tpu.pipeline_mode<synchronous>, transform_indices = @transform_4, window_bounds = array<i64: 1, 256>}, {pipeline_mode = #tpu.pipeline_mode<synchronous>, transform_indices = @transform_5, window_bounds = array<i64: 256, 256>}, {pipeline_mode = #tpu.pipeline_mode<synchronous>, transform_indices = @transform_6, window_bounds = array<i64: 1, 256>}, {pipeline_mode = #tpu.pipeline_mode<synchronous>, transform_indices = @transform_7, window_bounds = array<i64: 256, 128>}, {pipeline_mode = #tpu.pipeline_mode<synchronous>, transform_indices = @transform_8, window_bounds = array<i64: 1, 128>}, {transform_indices = @transform_9, window_bounds = array<i64: 4, 128>}]} {
    %c0 = arith.constant 0 : index
    %c0_0 = arith.constant 0 : index
    %0 = vector.load %arg1[%c0, %c0_0] : memref<4x12xf32, #tpu.memory_space<vmem>>, vector<4x12xf32>
    %1 = arith.truncf %0 : vector<4x12xf32> to vector<4x12xbf16>
    %c0_1 = arith.constant 0 : index
    %c0_2 = arith.constant 0 : index
    %2 = vector.load %arg3[%c0_1, %c0_2] : memref<12x256xf32, #tpu.memory_space<vmem>>, vector<12x256xf32>
    %3 = arith.truncf %2 : vector<12x256xf32> to vector<12x256xbf16>
    %cst = arith.constant dense<0.000000e+00> : vector<4x256xf32>
    %4 = tpu.matmul %1, %3, %cst {dimension_numbers = #tpu.dot_dimension_numbers<[1], [0], [0], [1], [0, 0, 1, 1], [], []>} : vector<4x12xbf16>, vector<12x256xbf16>, vector<4x256xf32> -> vector<4x256xf32>
    %c0_3 = arith.constant 0 : index
    %c0_4 = arith.constant 0 : index
    %5 = vector.load %arg2[%c0_3, %c0_4] : memref<4x4xf32, #tpu.memory_space<vmem>>, vector<4x4xf32>
    %6 = arith.truncf %5 : vector<4x4xf32> to vector<4x4xbf16>
    %c0_5 = arith.constant 0 : index
    %c0_6 = arith.constant 0 : index
    %7 = vector.load %arg4[%c0_5, %c0_6] : memref<4x256xf32, #tpu.memory_space<vmem>>, vector<4x256xf32>
    %8 = arith.truncf %7 : vector<4x256xf32> to vector<4x256xbf16>
    %cst_7 = arith.constant dense<0.000000e+00> : vector<4x256xf32>
    %9 = tpu.matmul %6, %8, %cst_7 {dimension_numbers = #tpu.dot_dimension_numbers<[1], [0], [0], [1], [0, 0, 1, 1], [], []>} : vector<4x4xbf16>, vector<4x256xbf16>, vector<4x256xf32> -> vector<4x256xf32>
    %10 = arith.addf %4, %9 : vector<4x256xf32>
    %c0_8 = arith.constant 0 : index
    %c0_9 = arith.constant 0 : index
    %11 = vector.load %arg5[%c0_8, %c0_9] : memref<1x256xf32, #tpu.memory_space<vmem>>, vector<1x256xf32>
    %12 = vector.broadcast %11 : vector<1x256xf32> to vector<4x256xf32>
    %13 = arith.addf %10, %12 : vector<4x256xf32>
    %cst_10 = arith.constant 0.000000e+00 : f32
    %14 = vector.broadcast %cst_10 : f32 to vector<4x256xf32>
    %15 = arith.maximumf %13, %14 : vector<4x256xf32>
    %c0_11 = arith.constant 0 : index
    %c0_12 = arith.constant 0 : index
    %16 = vector.load %arg11[%c0_11, %c0_12] : memref<4x256xf32, #tpu.memory_space<vmem>>, vector<4x256xf32>
    tpu.vector_store %arg11[%c0_11, %c0_12], %15 {strides = array<i32>} : memref<4x256xf32, #tpu.memory_space<vmem>>, vector<4x256xf32>,
    %c0_13 = arith.constant 0 : index
    %c0_14 = arith.constant 0 : index
    %17 = vector.load %arg11[%c0_13, %c0_14] : memref<4x256xf32, #tpu.memory_space<vmem>>, vector<4x256xf32>
    %18 = arith.truncf %17 : vector<4x256xf32> to vector<4x256xbf16>
    %c0_15 = arith.constant 0 : index
    %c0_16 = arith.constant 0 : index
    %19 = vector.load %arg6[%c0_15, %c0_16] : memref<256x256xf32, #tpu.memory_space<vmem>>, vector<256x256xf32>
    %20 = arith.truncf %19 : vector<256x256xf32> to vector<256x256xbf16>
    %cst_17 = arith.constant dense<0.000000e+00> : vector<4x256xf32>
    %21 = tpu.matmul %18, %20, %cst_17 {dimension_numbers = #tpu.dot_dimension_numbers<[1], [0], [0], [1], [0, 0, 1, 1], [], []>} : vector<4x256xbf16>, vector<256x256xbf16>, vector<4x256xf32> -> vector<4x256xf32>
    %c0_18 = arith.constant 0 : index
    %c0_19 = arith.constant 0 : index
    %22 = vector.load %arg7[%c0_18, %c0_19] : memref<1x256xf32, #tpu.memory_space<vmem>>, vector<1x256xf32>
    %23 = vector.broadcast %22 : vector<1x256xf32> to vector<4x256xf32>
    %24 = arith.addf %21, %23 : vector<4x256xf32>
    %cst_20 = arith.constant 0.000000e+00 : f32
    %25 = vector.broadcast %cst_20 : f32 to vector<4x256xf32>
    %26 = arith.maximumf %24, %25 : vector<4x256xf32>
    %c0_21 = arith.constant 0 : index
    %c0_22 = arith.constant 0 : index
    %27 = vector.load %arg12[%c0_21, %c0_22] : memref<4x256xf32, #tpu.memory_space<vmem>>, vector<4x256xf32>
    tpu.vector_store %arg12[%c0_21, %c0_22], %26 {strides = array<i32>} : memref<4x256xf32, #tpu.memory_space<vmem>>, vector<4x256xf32>,
    %c0_23 = arith.constant 0 : index
    %c0_24 = arith.constant 0 : index
    %28 = vector.load %arg12[%c0_23, %c0_24] : memref<4x256xf32, #tpu.memory_space<vmem>>, vector<4x256xf32>
    %29 = arith.truncf %28 : vector<4x256xf32> to vector<4x256xbf16>
    %c0_25 = arith.constant 0 : index
    %c0_26 = arith.constant 0 : index
    %30 = vector.load %arg8[%c0_25, %c0_26] : memref<256x128xf32, #tpu.memory_space<vmem>>, vector<256x128xf32>
    %31 = arith.truncf %30 : vector<256x128xf32> to vector<256x128xbf16>
    %cst_27 = arith.constant dense<0.000000e+00> : vector<4x128xf32>
    %32 = tpu.matmul %29, %31, %cst_27 {dimension_numbers = #tpu.dot_dimension_numbers<[1], [0], [0], [1], [0, 0, 1, 1], [], []>} : vector<4x256xbf16>, vector<256x128xbf16>, vector<4x128xf32> -> vector<4x128xf32>
    %c0_28 = arith.constant 0 : index
    %c0_29 = arith.constant 0 : index
    %33 = vector.load %arg9[%c0_28, %c0_29] : memref<1x128xf32, #tpu.memory_space<vmem>>, vector<1x128xf32>
    %34 = vector.broadcast %33 : vector<1x128xf32> to vector<4x128xf32>
    %35 = arith.addf %32, %34 : vector<4x128xf32>
    %c0_30 = arith.constant 0 : index
    %c0_31 = arith.constant 0 : index
    %36 = vector.load %arg10[%c0_30, %c0_31] : memref<4x128xf32, #tpu.memory_space<vmem>>, vector<4x128xf32>
    tpu.vector_store %arg10[%c0_30, %c0_31], %35 {strides = array<i32>} : memref<4x128xf32, #tpu.memory_space<vmem>>, vector<4x128xf32>,
    return
  }
  func.func @transform_0(%arg0: i32) -> (i32, i32) {
    %c0_i32 = arith.constant 0 : i32
    %c0_i32_0 = arith.constant 0 : i32
    return %arg0, %c0_i32 : i32, i32
  }
  func.func @transform_1(%arg0: i32) -> (i32, i32) {
    %c0_i32 = arith.constant 0 : i32
    %c0_i32_0 = arith.constant 0 : i32
    return %arg0, %c0_i32 : i32, i32
  }
  func.func @transform_2(%arg0: i32) -> (i32, i32) {
    %c0_i32 = arith.constant 0 : i32
    %c0_i32_0 = arith.constant 0 : i32
    %c0_i32_1 = arith.constant 0 : i32
    return %c0_i32, %c0_i32_0 : i32, i32
  }
  func.func @transform_3(%arg0: i32) -> (i32, i32) {
    %c0_i32 = arith.constant 0 : i32
    %c0_i32_0 = arith.constant 0 : i32
    %c0_i32_1 = arith.constant 0 : i32
    return %c0_i32, %c0_i32_0 : i32, i32
  }
  func.func @transform_4(%arg0: i32) -> (i32, i32) {
    %c0_i32 = arith.constant 0 : i32
    %c0_i32_0 = arith.constant 0 : i32
    %c0_i32_1 = arith.constant 0 : i32
    return %c0_i32, %c0_i32_0 : i32, i32
  }
  func.func @transform_5(%arg0: i32) -> (i32, i32) {
    %c0_i32 = arith.constant 0 : i32
    %c0_i32_0 = arith.constant 0 : i32
    %c0_i32_1 = arith.constant 0 : i32
    return %c0_i32, %c0_i32_0 : i32, i32
  }
  func.func @transform_6(%arg0: i32) -> (i32, i32) {
    %c0_i32 = arith.constant 0 : i32
    %c0_i32_0 = arith.constant 0 : i32
    %c0_i32_1 = arith.constant 0 : i32
    return %c0_i32, %c0_i32_0 : i32, i32
  }
  func.func @transform_7(%arg0: i32) -> (i32, i32) {
    %c0_i32 = arith.constant 0 : i32
    %c0_i32_0 = arith.constant 0 : i32
    %c0_i32_1 = arith.constant 0 : i32
    return %c0_i32, %c0_i32_0 : i32, i32
  }
  func.func @transform_8(%arg0: i32) -> (i32, i32) {
    %c0_i32 = arith.constant 0 : i32
    %c0_i32_0 = arith.constant 0 : i32
    %c0_i32_1 = arith.constant 0 : i32
    return %c0_i32, %c0_i32_0 : i32, i32
  }
  func.func @transform_9(%arg0: i32) -> (i32, i32) {
    %c0_i32 = arith.constant 0 : i32
    %c0_i32_0 = arith.constant 0 : i32
    return %arg0, %c0_i32 : i32, i32
  }
}

</mosaic_0001>

<llo_original>
// kernel: tpu_custom_call.1
$region0: #{tpu_custom_call.1}
  #allocation0 [shape = 'u32[]', space=smem, size = 0x4, offset = 0x4, fixed_abs, tag = 'smem constant byte address 0x4 - core index']
  #allocation1 [shape = 'u32[144,128]{1,0:T(1,128)}', space=vmem, size = 0x12000, scoped, tag = 'internal scratch']
  #allocation2 [shape = 'f32[4,256]{1,0:T(4,128)}', space=vmem, size = 0x1000, scoped, tag = 'scratch operand']
  #allocation3 [shape = 'f32[4,256]{1,0:T(4,128)}', space=vmem, size = 0x1000, scoped, tag = 'scratch operand']
  %s0 = inlined_call_operand.hbm [shape: f32[4,12], index: 0, kind: input, shape index: {}]
  %s1 = inlined_call_operand.hbm [shape: f32[4,4], index: 1, kind: input, shape index: {}]
  %s2 = inlined_call_operand.hbm [shape: f32[12,256], index: 2, kind: input, shape index: {}]
  %s3 = inlined_call_operand.vmem [shape: f32[4,256], index: 3, kind: input, shape index: {}]
  %s4 = inlined_call_operand.vmem [shape: f32[1,256], index: 4, kind: input, shape index: {}]
  %s5 = inlined_call_operand.hbm [shape: f32[256,256], index: 5, kind: input, shape index: {}]
  %s6 = inlined_call_operand.vmem [shape: f32[1,256], index: 6, kind: input, shape index: {}]
  %s7 = inlined_call_operand.hbm [shape: f32[256,128], index: 7, kind: input, shape index: {}]
  %s8 = inlined_call_operand.vmem [shape: f32[1,128], index: 8, kind: input, shape index: {}]
  %s9 = inlined_call_operand.hbm [shape: f32[4,128], index: 9, kind: output, shape index: {}]
  %s10 = sld [smem:[#allocation0]]
  $region66: #{tpu_custom_call.1} parent=0
    _
  %s12 = ssub.s32 1, %s10
  %s13 = scalar_select 0, %s12, %s10
  $region1: #{tpu_custom_call.1} parent=0
    #allocation4 [shape = 'u8[2048]{0}', space=vmem, size = 0x800, scoped, tag = 'input window, operand 0, single buffered']
    #allocation5 [shape = 's32[1]{0}', space=sflag, size = 0x4, scoped, tag = 'scoped memory for tpu_custom_call.1']
    #allocation6 [shape = 's32[1]{0}', space=sflag, size = 0x4, scoped, tag = 'scoped memory for tpu_custom_call.1']
    #allocation7 [shape = 'u8[2048]{0}', space=vmem, size = 0x800, scoped, tag = 'input window, operand 1, single buffered']
    #allocation8 [shape = 's32[1]{0}', space=sflag, size = 0x4, scoped, tag = 'scoped memory for tpu_custom_call.1']
    #allocation9 [shape = 'u8[16384]{0}', space=vmem, size = 0x4000, scoped, tag = 'input window, operand 2, single buffered']
    #allocation10 [shape = 'u8[262144]{0}', space=vmem, size = 0x40000, scoped, tag = 'input window, operand 5, single buffered']
    #allocation11 [shape = 's32[1]{0}', space=sflag, size = 0x4, scoped, tag = 'scoped memory for tpu_custom_call.1']
    #allocation12 [shape = 'u8[131072]{0}', space=vmem, size = 0x20000, scoped, tag = 'input window, operand 7, single buffered']
    #allocation13 [shape = 'u8[2048]{0}', space=vmem, size = 0x800, scoped, tag = 'output window, operand 0, single buffered']
    %14 = vsyncpa [#allocation5], 0
    %15 = vsyncpa [#allocation8], 0
    %16 = vsyncpa [#allocation11], 0
    %17 = vsyncpa [#allocation6], 0
    // Predicated region
    $region2: #{tpu_custom_call.1} parent=1 // pred_check
      _
    $region3: #{tpu_custom_call.1} parent=1 // pred_check_branch
      %19 = sbr.rel (0) target = $region5
    $region4: #{tpu_custom_call.1} parent=1 // pred_region
      %s21 = ssub.s32 64, 64
      %22 = vsyncadd [#allocation5], %s21
      %s24 = sshll.u32 [#allocation4], 4
      %s25 = int_to_ptr.vmem [resolvable:$true] %s24
      %27 = dma.hbm_to_vmem [thread:$0]  %s0, 64, %s25, [#allocation5]
    $region5: #{tpu_custom_call.1} parent=1 // pred_fallthru
      _
    // Predicated region
    $region6: #{tpu_custom_call.1} parent=1 // pred_check
      _
    $region7: #{tpu_custom_call.1} parent=1 // pred_check_branch
      %29 = sbr.rel (0) target = $region9
    $region8: #{tpu_custom_call.1} parent=1 // pred_region
      %s31 = ssub.s32 64, 64
      %32 = vsyncadd [#allocation8], %s31
      %s34 = sshll.u32 [#allocation7], 4
      %s35 = int_to_ptr.vmem [resolvable:$true] %s34
      %37 = dma.hbm_to_vmem [thread:$0]  %s1, 64, %s35, [#allocation8]
    $region9: #{tpu_custom_call.1} parent=1 // pred_fallthru
      _
    // Predicated region
    $region10: #{tpu_custom_call.1} parent=1 // pred_check
      _
    $region11: #{tpu_custom_call.1} parent=1 // pred_check_branch
      %39 = sbr.rel (0) target = $region13
    $region12: #{tpu_custom_call.1} parent=1 // pred_region
      %s41 = ssub.s32 512, 512
      %42 = vsyncadd [#allocation8], %s41
      %s43 = sshll.u32 [#allocation9], 4
      %s44 = int_to_ptr.vmem [resolvable:$true] %s43
      %49 = dma.hbm_to_vmem [thread:$0]  %s2, 512, %s44, [#allocation8], 256, 256, 16
    $region13: #{tpu_custom_call.1} parent=1 // pred_fallthru
      _
    // Predicated region
    $region14: #{tpu_custom_call.1} parent=1 // pred_check
      _
    $region15: #{tpu_custom_call.1} parent=1 // pred_check_branch
      %51 = sbr.rel (0) target = $region17
    $region16: #{tpu_custom_call.1} parent=1 // pred_region
      _
    $region17: #{tpu_custom_call.1} parent=1 // pred_fallthru
      _
    // Predicated region
    $region18: #{tpu_custom_call.1} parent=1 // pred_check
      _
    $region19: #{tpu_custom_call.1} parent=1 // pred_check_branch
      %53 = sbr.rel (0) target = $region21
    $region20: #{tpu_custom_call.1} parent=1 // pred_region
      _
    $region21: #{tpu_custom_call.1} parent=1 // pred_fallthru
      _
    // Predicated region
    $region22: #{tpu_custom_call.1} parent=1 // pred_check
      _
    $region23: #{tpu_custom_call.1} parent=1 // pred_check_branch
      %55 = sbr.rel (0) target = $region25
    $region24: #{tpu_custom_call.1} parent=1 // pred_region
      %s57 = ssub.s32 8192, 8192
      %58 = vsyncadd [#allocation11], %s57
      %s59 = sshll.u32 [#allocation10], 4
      %s60 = int_to_ptr.vmem [resolvable:$true] %s59
      %65 = dma.hbm_to_vmem [thread:$0]  %s5, 8192, %s60, [#allocation11], 256, 256, 16
    $region25: #{tpu_custom_call.1} parent=1 // pred_fallthru
      _
    // Predicated region
    $region26: #{tpu_custom_call.1} parent=1 // pred_check
      _
    $region27: #{tpu_custom_call.1} parent=1 // pred_check_branch
      %67 = sbr.rel (0) target = $region29
    $region28: #{tpu_custom_call.1} parent=1 // pred_region
      _
    $region29: #{tpu_custom_call.1} parent=1 // pred_fallthru
      _
    // Predicated region
    $region30: #{tpu_custom_call.1} parent=1 // pred_check
      _
    $region31: #{tpu_custom_call.1} parent=1 // pred_check_branch
      %69 = sbr.rel (0) target = $region33
    $region32: #{tpu_custom_call.1} parent=1 // pred_region
      %s71 = ssub.s32 4096, 4096
      %72 = vsyncadd [#allocation11], %s71
      %s73 = sshll.u32 [#allocation12], 4
      %s74 = int_to_ptr.vmem [resolvable:$true] %s73
      %79 = dma.hbm_to_vmem [thread:$0]  %s7, 4096, %s74, [#allocation11], 128, 128, 8
    $region33: #{tpu_custom_call.1} parent=1 // pred_fallthru
      _
    // Predicated region
    $region34: #{tpu_custom_call.1} parent=1 // pred_check
      _
    $region35: #{tpu_custom_call.1} parent=1 // pred_check_branch
      %81 = sbr.rel (0) target = $region37
    $region36: #{tpu_custom_call.1} parent=1 // pred_region
      _
    $region37: #{tpu_custom_call.1} parent=1 // pred_fallthru
      _
    // Predicated region
    $region38: #{tpu_custom_call.1} parent=1 // pred_check
      _
    $region39: #{tpu_custom_call.1} parent=1 // pred_check_branch
      %83 = sbr.rel (0) target = $region41
    $region40: #{tpu_custom_call.1} parent=1 // pred_region
      %84 = dma.done [#allocation5], 64
    $region41: #{tpu_custom_call.1} parent=1 // pred_fallthru
      _
    // Predicated region
    $region42: #{tpu_custom_call.1} parent=1 // pred_check
      _
    $region43: #{tpu_custom_call.1} parent=1 // pred_check_branch
      %86 = sbr.rel (0) target = $region45
    $region44: #{tpu_custom_call.1} parent=1 // pred_region
      %87 = dma.done [#allocation8], 64
    $region45: #{tpu_custom_call.1} parent=1 // pred_fallthru
      _
    // Predicated region
    $region46: #{tpu_custom_call.1} parent=1 // pred_check
      _
    $region47: #{tpu_custom_call.1} parent=1 // pred_check_branch
      %89 = sbr.rel (0) target = $region49
    $region48: #{tpu_custom_call.1} parent=1 // pred_region
      %90 = dma.done [#allocation8], 512
    $region49: #{tpu_custom_call.1} parent=1 // pred_fallthru
      _
    // Predicated region
    $region50: #{tpu_custom_call.1} parent=1 // pred_check
      _
    $region51: #{tpu_custom_call.1} parent=1 // pred_check_branch
      %92 = sbr.rel (0) target = $region53
    $region52: #{tpu_custom_call.1} parent=1 // pred_region
      %93 = dma.done [#allocation11], 8192
    $region53: #{tpu_custom_call.1} parent=1 // pred_fallthru
      _
    // Predicated region
    $region54: #{tpu_custom_call.1} parent=1 // pred_check
      _
    $region55: #{tpu_custom_call.1} parent=1 // pred_check_branch
      %95 = sbr.rel (0) target = $region57
    $region56: #{tpu_custom_call.1} parent=1 // pred_region
      %96 = dma.done [#allocation11], 4096
    $region57: #{tpu_custom_call.1} parent=1 // pred_fallthru
      _
    %v98 = vld [vmem:[#allocation4] sm:$0xf]
    %v99 = vpack.c.bf16 %v98, %v98
    %v100 = vld [vmem:[#allocation9] sm:$0xff]
    %v101 = vld [vmem:[#allocation9 + $0x8] sm:$0xff]
    %v102 = vld [vmem:[#allocation9 + $0x10] sm:$0xf]
    %v103 = vld [vmem:[#allocation9 + $0x18] sm:$0xf]
    %v104 = vpack.c.bf16 %v102, %v100
    %v105 = vpack.c.bf16 %v103, %v101
    %v106 = vld [vmem:[#allocation7] sm:$0xf]
    %v107 = vpack.c.bf16 %v106, %v106
    %v108 = vld [vmem:[%s3] sm:$0xff]
    %v110 = vcombine.high %v108, %v108
    %v112 = vpack.c.bf16 %v108, %v108
    %v113 = vpack.c.bf16 %v110, %v110
    %vm114 = vcmask 31744
    %v116 = vsel %vm114, %v107, 0
    %vm118 = vcmask 1041408
    %v120 = vsel %vm118, %v112, 0
    %v123 = vsel %vm118, %v113, 0
    %125 = vmatprep.subr.bf16.mxu0 %v123
    %126 = vmatpush1.bf16.msra.mxu0 %v120
    %127 = vmatprep.subr.bf16.mxu0 0
    %128 = vmatpush1.bf16.msra.mxu0 0
    %129 = vmatprep.subr.bf16.mxu0 0
    %130 = vmatpush1.bf16.msra.mxu0 0
    %131 = vmatprep.subr.bf16.mxu0 0
    %132 = vmatpush1.bf16.msra.mxu0 0
    %133 = vmatprep.subr.bf16.mxu0 0
    %134 = vmatpush1.bf16.msra.mxu0 0
    %135 = vmatprep.subr.bf16.mxu0 0
    %136 = vmatpush1.bf16.msra.mxu0 0
    %137 = vmatprep.subr.bf16.mxu0 0
    %138 = vmatpush1.bf16.msra.mxu0 0
    %139 = vmatprep.subr.bf16.mxu0 0
    %140 = vmatpush1.bf16.msra.mxu0 0
    %141 = vmatprep.subr.bf16.mxu0 0
    %142 = vmatpush1.bf16.msra.mxu0 0
    %143 = vmatprep.subr.bf16.mxu0 0
    %144 = vmatpush1.bf16.msra.mxu0 0
    %145 = vmatprep.subr.bf16.mxu0 0
    %146 = vmatpush1.bf16.msra.mxu0 0
    %147 = vmatprep.subr.bf16.mxu0 0
    %148 = vmatpush1.bf16.msra.mxu0 0
    %149 = vmatprep.subr.bf16.mxu0 0
    %150 = vmatpush1.bf16.msra.mxu0 0
    %151 = vmatprep.subr.bf16.mxu0 0
    %152 = vmatpush1.bf16.msra.mxu0 0
    %153 = vmatprep.subr.bf16.mxu0 0
    %154 = vmatpush1.bf16.msra.mxu0 0
    %155 = vmatprep.subr.bf16.mxu0 0
    %156 = vmatpush1.bf16.msra.mxu0 0
    %157 = vmatprep.mubr.bf16.mxu0 0
    %158 = vmatmul.mubr.bf16.gmra.mrb[0].mxu0 %v116
    %v159 = vpop.f32.mrb[0].mxu0
    %v160 = vadd.f32 0.0, %v159
    %v161 = vpop.f32.mrb[0].mxu0
    %v162 = vadd.f32 0.0, %v161
    %v163 = vpop.f32.mrb[0].mxu0
    %v164 = vpop.f32.mrb[0].mxu0
    %165 = vdwg.mxu0
    %vm166 = vcmask 97280
    %v168 = vsel %vm166, %v99, 0
    %vm170 = vcmask 1045504
    %v172 = vsel %vm170, %v104, 0
    %v175 = vsel %vm170, %v105, 0
    %177 = vmatprep.subr.bf16.mxu0 %v175
    %178 = vmatpush1.bf16.msra.mxu0 %v172
    %179 = vmatprep.subr.bf16.mxu0 0
    %180 = vmatpush1.bf16.msra.mxu0 0
    %181 = vmatprep.subr.bf16.mxu0 0
    %182 = vmatpush1.bf16.msra.mxu0 0
    %183 = vmatprep.subr.bf16.mxu0 0
    %184 = vmatpush1.bf16.msra.mxu0 0
    %185 = vmatprep.subr.bf16.mxu0 0
    %186 = vmatpush1.bf16.msra.mxu0 0
    %187 = vmatprep.subr.bf16.mxu0 0
    %188 = vmatpush1.bf16.msra.mxu0 0
    %189 = vmatprep.subr.bf16.mxu0 0
    %190 = vmatpush1.bf16.msra.mxu0 0
    %191 = vmatprep.subr.bf16.mxu0 0
    %192 = vmatpush1.bf16.msra.mxu0 0
    %193 = vmatprep.subr.bf16.mxu0 0
    %194 = vmatpush1.bf16.msra.mxu0 0
    %195 = vmatprep.subr.bf16.mxu0 0
    %196 = vmatpush1.bf16.msra.mxu0 0
    %197 = vmatprep.subr.bf16.mxu0 0
    %198 = vmatpush1.bf16.msra.mxu0 0
    %199 = vmatprep.subr.bf16.mxu0 0
    %200 = vmatpush1.bf16.msra.mxu0 0
    %201 = vmatprep.subr.bf16.mxu0 0
    %202 = vmatpush1.bf16.msra.mxu0 0
    %203 = vmatprep.subr.bf16.mxu0 0
    %204 = vmatpush1.bf16.msra.mxu0 0
    %205 = vmatprep.subr.bf16.mxu0 0
    %206 = vmatpush1.bf16.msra.mxu0 0
    %207 = vmatprep.subr.bf16.mxu0 0
    %208 = vmatpush1.bf16.msra.mxu0 0
    %209 = vmatprep.mubr.bf16.mxu0 0
    %210 = vmatmul.mubr.bf16.gmra.mrb[0].mxu0 %v168
    %v211 = vpop.f32.mrb[0].mxu0
    %v212 = vadd.f32 %v160, %v211
    %v213 = vpop.f32.mrb[0].mxu0
    %v214 = vadd.f32 %v162, %v213
    %v215 = vpop.f32.mrb[0].mxu0
    %v216 = vpop.f32.mrb[0].mxu0
    %217 = vdwg.mxu0
    %v218 = vld [vmem:[%s4] sm:$0x3]
    %v220 = vlaneseq
    %v221 = vshrl.u32 %v220, 7
    %v222 = vsub.s32 0, %v221
    %v223 = vrot.slane %v218, %v222
    %v224 = vlaneseq
    %v225 = vshrl.u32 %v224, 7
    %v226 = vsub.s32 1, %v225
    %v227 = vrot.slane %v218, %v226
    %v230 = vadd.f32 %v212, %v223
    %v231 = vadd.f32 %v214, %v227
    %v232 = vmax.f32 %v230, 0.0
    %v233 = vmax.f32 %v231, 0.0
    %v236 = vcombine.low %v232, %v233
    %238 = vst [vmem:[#allocation2] sm:$0xff] %v236
    %v239 = vld [vmem:[#allocation2] sm:$0xff]
    %v241 = vcombine.high %v239, %v239
    %v243 = vpack.c.bf16 %v239, %v239
    %v244 = vpack.c.bf16 %v241, %v241
    %v245 = vld [vmem:[#allocation10] sm:$0xff]
    %v246 = vld [vmem:[#allocation10 + $0x8] sm:$0xff]
    %v247 = vld [vmem:[#allocation10 + $0x10] sm:$0xff]
    %v248 = vld [vmem:[#allocation10 + $0x18] sm:$0xff]
    %v249 = vld [vmem:[#allocation10 + $0x20] sm:$0xff]
    %v250 = vld [vmem:[#allocation10 + $0x28] sm:$0xff]
    %v251 = vld [vmem:[#allocation10 + $0x30] sm:$0xff]
    %v252 = vld [vmem:[#allocation10 + $0x38] sm:$0xff]
    %v253 = vld [vmem:[#allocation10 + $0x40] sm:$0xff]
    %v254 = vld [vmem:[#allocation10 + $0x48] sm:$0xff]
    %v255 = vld [vmem:[#allocation10 + $0x50] sm:$0xff]
    %v256 = vld [vmem:[#allocation10 + $0x58] sm:$0xff]
    %v257 = vld [vmem:[#allocation10 + $0x60] sm:$0xff]
    %v258 = vld [vmem:[#allocation10 + $0x68] sm:$0xff]
    %v259 = vld [vmem:[#allocation10 + $0x70] sm:$0xff]
    %v260 = vld [vmem:[#allocation10 + $0x78] sm:$0xff]
    %v261 = vld [vmem:[#allocation10 + $0x80] sm:$0xff]
    %v262 = vld [vmem:[#allocation10 + $0x88] sm:$0xff]
    %v263 = vld [vmem:[#allocation10 + $0x90] sm:$0xff]
    %v264 = vld [vmem:[#allocation10 + $0x98] sm:$0xff]
    %v265 = vld [vmem:[#allocation10 + $0xa0] sm:$0xff]
    %v266 = vld [vmem:[#allocation10 + $0xa8] sm:$0xff]
    %v267 = vld [vmem:[#allocation10 + $0xb0] sm:$0xff]
    %v268 = vld [vmem:[#allocation10 + $0xb8] sm:$0xff]
    %v269 = vld [vmem:[#allocation10 + $0xc0] sm:$0xff]
    %v270 = vld [vmem:[#allocation10 + $0xc8] sm:$0xff]
    %v271 = vld [vmem:[#allocation10 + $0xd0] sm:$0xff]
    %v272 = vld [vmem:[#allocation10 + $0xd8] sm:$0xff]
    %v273 = vld [vmem:[#allocation10 + $0xe0] sm:$0xff]
    %v274 = vld [vmem:[#allocation10 + $0xe8] sm:$0xff]
    %v275 = vld [vmem:[#allocation10 + $0xf0] sm:$0xff]
    %v276 = vld [vmem:[#allocation10 + $0xf8] sm:$0xff]
    %v277 = vld [vmem:[#allocation10 + $0x100] sm:$0xff]
    %v278 = vld [vmem:[#allocation10 + $0x108] sm:$0xff]
    %v279 = vld [vmem:[#allocation10 + $0x110] sm:$0xff]
    %v280 = vld [vmem:[#allocation10 + $0x118] sm:$0xff]
    %v281 = vld [vmem:[#allocation10 + $0x120] sm:$0xff]
    %v282 = vld [vmem:[#allocation10 + $0x128] sm:$0xff]
    %v283 = vld [vmem:[#allocation10 + $0x130] sm:$0xff]
    %v284 = vld [vmem:[#allocation10 + $0x138] sm:$0xff]
    %v285 = vld [vmem:[#allocation10 + $0x140] sm:$0xff]
    %v286 = vld [vmem:[#allocation10 + $0x148] sm:$0xff]
    %v287 = vld [vmem:[#allocation10 + $0x150] sm:$0xff]
    %v288 = vld [vmem:[#allocation10 + $0x158] sm:$0xff]
    %v289 = vld [vmem:[#allocation10 + $0x160] sm:$0xff]
    %v290 = vld [vmem:[#allocation10 + $0x168] sm:$0xff]
    %v291 = vld [vmem:[#allocation10 + $0x170] sm:$0xff]
    %v292 = vld [vmem:[#allocation10 + $0x178] sm:$0xff]
    %v293 = vld [vmem:[#allocation10 + $0x180] sm:$0xff]
    %v294 = vld [vmem:[#allocation10 + $0x188] sm:$0xff]
    %v295 = vld [vmem:[#allocation10 + $0x190] sm:$0xff]
    %v296 = vld [vmem:[#allocation10 + $0x198] sm:$0xff]
    %v297 = vld [vmem:[#allocation10 + $0x1a0] sm:$0xff]
    %v298 = vld [vmem:[#allocation10 + $0x1a8] sm:$0xff]
    %v299 = vld [vmem:[#allocation10 + $0x1b0] sm:$0xff]
    %v300 = vld [vmem:[#allocation10 + $0x1b8] sm:$0xff]
    %v301 = vld [vmem:[#allocation10 + $0x1c0] sm:$0xff]
    %v302 = vld [vmem:[#allocation10 + $0x1c8] sm:$0xff]
    %v303 = vld [vmem:[#allocation10 + $0x1d0] sm:$0xff]
    %v304 = vld [vmem:[#allocation10 + $0x1d8] sm:$0xff]
    %v305 = vld [vmem:[#allocation10 + $0x1e0] sm:$0xff]
    %v306 = vld [vmem:[#allocation10 + $0x1e8] sm:$0xff]
    %v307 = vld [vmem:[#allocation10 + $0x1f0] sm:$0xff]
    %v308 = vld [vmem:[#allocation10 + $0x1f8] sm:$0xff]
    %v309 = vpack.c.bf16 %v247, %v245
    %v310 = vpack.c.bf16 %v248, %v246
    %v311 = vpack.c.bf16 %v251, %v249
    %v312 = vpack.c.bf16 %v252, %v250
    %v313 = vpack.c.bf16 %v255, %v253
    %v314 = vpack.c.bf16 %v256, %v254
    %v315 = vpack.c.bf16 %v259, %v257
    %v316 = vpack.c.bf16 %v260, %v258
    %v317 = vpack.c.bf16 %v263, %v261
    %v318 = vpack.c.bf16 %v264, %v262
    %v319 = vpack.c.bf16 %v267, %v265
    %v320 = vpack.c.bf16 %v268, %v266
    %v321 = vpack.c.bf16 %v271, %v269
    %v322 = vpack.c.bf16 %v272, %v270
    %v323 = vpack.c.bf16 %v275, %v273
    %v324 = vpack.c.bf16 %v276, %v274
    %v325 = vpack.c.bf16 %v279, %v277
    %v326 = vpack.c.bf16 %v280, %v278
    %v327 = vpack.c.bf16 %v283, %v281
    %v328 = vpack.c.bf16 %v284, %v282
    %v329 = vpack.c.bf16 %v287, %v285
    %v330 = vpack.c.bf16 %v288, %v286
    %v331 = vpack.c.bf16 %v291, %v289
    %v332 = vpack.c.bf16 %v292, %v290
    %v333 = vpack.c.bf16 %v295, %v293
    %v334 = vpack.c.bf16 %v296, %v294
    %v335 = vpack.c.bf16 %v299, %v297
    %v336 = vpack.c.bf16 %v300, %v298
    %v337 = vpack.c.bf16 %v303, %v301
    %v338 = vpack.c.bf16 %v304, %v302
    %v339 = vpack.c.bf16 %v307, %v305
    %v340 = vpack.c.bf16 %v308, %v306
    %v341 = vld [vmem:[%s6] sm:$0x3]
    %v343 = vlaneseq
    %v344 = vshrl.u32 %v343, 7
    %v345 = vsub.s32 0, %v344
    %v346 = vrot.slane %v341, %v345
    %v347 = vlaneseq
    %v348 = vshrl.u32 %v347, 7
    %v349 = vsub.s32 1, %v348
    %v350 = vrot.slane %v341, %v349
    %353 = vmatprep.subr.bf16.mxu0 %v310
    %354 = vmatpush1.bf16.msra.mxu0 %v309
    %355 = vmatprep.subr.bf16.mxu0 %v312
    %356 = vmatpush1.bf16.msra.mxu0 %v311
    %357 = vmatprep.subr.bf16.mxu0 %v314
    %358 = vmatpush1.bf16.msra.mxu0 %v313
    %359 = vmatprep.subr.bf16.mxu0 %v316
    %360 = vmatpush1.bf16.msra.mxu0 %v315
    %361 = vmatprep.subr.bf16.mxu0 %v318
    %362 = vmatpush1.bf16.msra.mxu0 %v317
    %363 = vmatprep.subr.bf16.mxu0 %v320
    %364 = vmatpush1.bf16.msra.mxu0 %v319
    %365 = vmatprep.subr.bf16.mxu0 %v322
    %366 = vmatpush1.bf16.msra.mxu0 %v321
    %367 = vmatprep.subr.bf16.mxu0 %v324
    %368 = vmatpush1.bf16.msra.mxu0 %v323
    %369 = vmatprep.subr.bf16.mxu0 %v326
    %370 = vmatpush1.bf16.msra.mxu0 %v325
    %371 = vmatprep.subr.bf16.mxu0 %v328
    %372 = vmatpush1.bf16.msra.mxu0 %v327
    %373 = vmatprep.subr.bf16.mxu0 %v330
    %374 = vmatpush1.bf16.msra.mxu0 %v329
    %375 = vmatprep.subr.bf16.mxu0 %v332
    %376 = vmatpush1.bf16.msra.mxu0 %v331
    %377 = vmatprep.subr.bf16.mxu0 %v334
    %378 = vmatpush1.bf16.msra.mxu0 %v333
    %379 = vmatprep.subr.bf16.mxu0 %v336
    %380 = vmatpush1.bf16.msra.mxu0 %v335
    %381 = vmatprep.subr.bf16.mxu0 %v338
    %382 = vmatpush1.bf16.msra.mxu0 %v337
    %383 = vmatprep.subr.bf16.mxu0 %v340
    %384 = vmatpush1.bf16.msra.mxu0 %v339
    %385 = vmatprep.mubr.bf16.mxu0 %v244
    %386 = vmatmul.mubr.bf16.gmra.mrb[0].mxu0 %v243
    %v387 = vpop.f32.mrb[0].mxu0
    %v388 = vadd.f32 %v346, %v387
    %v389 = vpop.f32.mrb[0].mxu0
    %v390 = vadd.f32 %v350, %v389
    %v391 = vpop.f32.mrb[0].mxu0
    %v392 = vpop.f32.mrb[0].mxu0
    %393 = vdwg.mxu0
    %v394 = vmax.f32 %v388, 0.0
    %v395 = vmax.f32 %v390, 0.0
    %v398 = vcombine.low %v394, %v395
    %400 = vst [vmem:[#allocation3] sm:$0xff] %v398
    %v401 = vld [vmem:[#allocation3] sm:$0xff]
    %v403 = vcombine.high %v401, %v401
    %v405 = vpack.c.bf16 %v401, %v401
    %v406 = vpack.c.bf16 %v403, %v403
    %v407 = vld [vmem:[#allocation12] sm:$0xff]
    %v408 = vld [vmem:[#allocation12 + $0x8] sm:$0xff]
    %v409 = vld [vmem:[#allocation12 + $0x10] sm:$0xff]
    %v410 = vld [vmem:[#allocation12 + $0x18] sm:$0xff]
    %v411 = vld [vmem:[#allocation12 + $0x20] sm:$0xff]
    %v412 = vld [vmem:[#allocation12 + $0x28] sm:$0xff]
    %v413 = vld [vmem:[#allocation12 + $0x30] sm:$0xff]
    %v414 = vld [vmem:[#allocation12 + $0x38] sm:$0xff]
    %v415 = vld [vmem:[#allocation12 + $0x40] sm:$0xff]
    %v416 = vld [vmem:[#allocation12 + $0x48] sm:$0xff]
    %v417 = vld [vmem:[#allocation12 + $0x50] sm:$0xff]
    %v418 = vld [vmem:[#allocation12 + $0x58] sm:$0xff]
    %v419 = vld [vmem:[#allocation12 + $0x60] sm:$0xff]
    %v420 = vld [vmem:[#allocation12 + $0x68] sm:$0xff]
    %v421 = vld [vmem:[#allocation12 + $0x70] sm:$0xff]
    %v422 = vld [vmem:[#allocation12 + $0x78] sm:$0xff]
    %v423 = vld [vmem:[#allocation12 + $0x80] sm:$0xff]
    %v424 = vld [vmem:[#allocation12 + $0x88] sm:$0xff]
    %v425 = vld [vmem:[#allocation12 + $0x90] sm:$0xff]
    %v426 = vld [vmem:[#allocation12 + $0x98] sm:$0xff]
    %v427 = vld [vmem:[#allocation12 + $0xa0] sm:$0xff]
    %v428 = vld [vmem:[#allocation12 + $0xa8] sm:$0xff]
    %v429 = vld [vmem:[#allocation12 + $0xb0] sm:$0xff]
    %v430 = vld [vmem:[#allocation12 + $0xb8] sm:$0xff]
    %v431 = vld [vmem:[#allocation12 + $0xc0] sm:$0xff]
    %v432 = vld [vmem:[#allocation12 + $0xc8] sm:$0xff]
    %v433 = vld [vmem:[#allocation12 + $0xd0] sm:$0xff]
    %v434 = vld [vmem:[#allocation12 + $0xd8] sm:$0xff]
    %v435 = vld [vmem:[#allocation12 + $0xe0] sm:$0xff]
    %v436 = vld [vmem:[#allocation12 + $0xe8] sm:$0xff]
    %v437 = vld [vmem:[#allocation12 + $0xf0] sm:$0xff]
    %v438 = vld [vmem:[#allocation12 + $0xf8] sm:$0xff]
    %v439 = vpack.c.bf16 %v408, %v407
    %v440 = vpack.c.bf16 %v410, %v409
    %v441 = vpack.c.bf16 %v412, %v411
    %v442 = vpack.c.bf16 %v414, %v413
    %v443 = vpack.c.bf16 %v416, %v415
    %v444 = vpack.c.bf16 %v418, %v417
    %v445 = vpack.c.bf16 %v420, %v419
    %v446 = vpack.c.bf16 %v422, %v421
    %v447 = vpack.c.bf16 %v424, %v423
    %v448 = vpack.c.bf16 %v426, %v425
    %v449 = vpack.c.bf16 %v428, %v427
    %v450 = vpack.c.bf16 %v430, %v429
    %v451 = vpack.c.bf16 %v432, %v431
    %v452 = vpack.c.bf16 %v434, %v433
    %v453 = vpack.c.bf16 %v436, %v435
    %v454 = vpack.c.bf16 %v438, %v437
    %v455 = vld [vmem:[%s8] sm:$0x1]
    %v457 = vlaneseq
    %v458 = vshrl.u32 %v457, 7
    %v459 = vsub.s32 0, %v458
    %v460 = vrot.slane %v455, %v459
    %462 = vmatprep.subr.bf16.mxu0 0
    %463 = vmatpush1.bf16.msra.mxu0 %v439
    %464 = vmatprep.subr.bf16.mxu0 0
    %465 = vmatpush1.bf16.msra.mxu0 %v440
    %466 = vmatprep.subr.bf16.mxu0 0
    %467 = vmatpush1.bf16.msra.mxu0 %v441
    %468 = vmatprep.subr.bf16.mxu0 0
    %469 = vmatpush1.bf16.msra.mxu0 %v442
    %470 = vmatprep.subr.bf16.mxu0 0
    %471 = vmatpush1.bf16.msra.mxu0 %v443
    %472 = vmatprep.subr.bf16.mxu0 0
    %473 = vmatpush1.bf16.msra.mxu0 %v444
    %474 = vmatprep.subr.bf16.mxu0 0
    %475 = vmatpush1.bf16.msra.mxu0 %v445
    %476 = vmatprep.subr.bf16.mxu0 0
    %477 = vmatpush1.bf16.msra.mxu0 %v446
    %478 = vmatprep.subr.bf16.mxu0 0
    %479 = vmatpush1.bf16.msra.mxu0 %v447
    %480 = vmatprep.subr.bf16.mxu0 0
    %481 = vmatpush1.bf16.msra.mxu0 %v448
    %482 = vmatprep.subr.bf16.mxu0 0
    %483 = vmatpush1.bf16.msra.mxu0 %v449
    %484 = vmatprep.subr.bf16.mxu0 0
    %485 = vmatpush1.bf16.msra.mxu0 %v450
    %486 = vmatprep.subr.bf16.mxu0 0
    %487 = vmatpush1.bf16.msra.mxu0 %v451
    %488 = vmatprep.subr.bf16.mxu0 0
    %489 = vmatpush1.bf16.msra.mxu0 %v452
    %490 = vmatprep.subr.bf16.mxu0 0
    %491 = vmatpush1.bf16.msra.mxu0 %v453
    %492 = vmatprep.subr.bf16.mxu0 0
    %493 = vmatpush1.bf16.msra.mxu0 %v454
    %494 = vmatprep.mubr.bf16.mxu0 %v406
    %495 = vmatmul.mubr.bf16.gmra.mrb[0].mxu0 %v405
    %v496 = vpop.f32.mrb[0].mxu0
    %v497 = vadd.f32 %v460, %v496
    %v498 = vpop.f32.mrb[0].mxu0
    %v499 = vpop.f32.mrb[0].mxu0
    %v500 = vpop.f32.mrb[0].mxu0
    %501 = vdwg.mxu0
    %502 = vst [vmem:[#allocation13] sm:$0xf] %v497
    // Predicated region
    $region58: #{tpu_custom_call.1} parent=1 // pred_check
      _
    $region59: #{tpu_custom_call.1} parent=1 // pred_check_branch
      %504 = sbr.rel (0) target = $region61
    $region60: #{tpu_custom_call.1} parent=1 // pred_region
      %s506 = ssub.s32 64, 64
      %507 = vsyncadd [#allocation6], %s506
      %s509 = sshll.u32 [#allocation13], 4
      %s510 = int_to_ptr.vmem [resolvable:$true] %s509
      %512 = dma.vmem_to_hbm [thread:$0]  %s510, 64, %s9, [#allocation6]
    $region61: #{tpu_custom_call.1} parent=1 // pred_fallthru
      _
    // Predicated region
    $region62: #{tpu_custom_call.1} parent=1 // pred_check
      _
    $region63: #{tpu_custom_call.1} parent=1 // pred_check_branch
      %514 = sbr.rel (0) target = $region65
    $region64: #{tpu_custom_call.1} parent=1 // pred_region
      %515 = dma.done [#allocation6], 64
    $region65: #{tpu_custom_call.1} parent=1 // pred_fallthru
      _
    %516 = vsyncpa [#allocation5], 1
    %517 = vsyncpa [#allocation8], 1
    %518 = vsyncpa [#allocation11], 1
    %519 = vsyncpa [#allocation6], 1

</llo_original>
